<compile_context>
chip_gen: v6e
topology: v6e:2x2x1
jax: 0.10.0
libtpu: 0.0.40
codegen_flags: <defaults>
</compile_context>

<pallas_src>
import functools

import jax
import jax.numpy as jnp
from jax.experimental import pallas as pl
from jax.experimental.pallas import tpu as pltpu


_TILE_C = 1024                    # lane-dense last dim (multiple of 128)
_MAX_TILE_R = 512                 # 512 x 1024 f32 = 2 MiB per buffer (1-4 MiB sweet spot)
_VMEM_LIMIT_BYTES = 32 * 1024 * 1024   # fits every generation (v7x has only 64 MiB physical)


def _mse_kernel(lw_ref, pred_ref, target_ref, out_ref):
    lw = lw_ref[0]
    diff = pred_ref[...] - target_ref[...]
    out_ref[...] = (lw + diff * diff).astype(out_ref.dtype)


def _mse_weighted_kernel(lw_ref, pred_ref, target_ref, weight_ref, out_ref):
    lw = lw_ref[0]
    diff = pred_ref[...] - target_ref[...]
    out_ref[...] = (lw + diff * diff * weight_ref[...]).astype(out_ref.dtype)


def _flatten_lane_dense(x, tile_c):
    """Flatten to a (rows, tile_c) slab; zero-pad the tail if total % tile_c != 0."""
    flat = x.reshape(-1)
    total = flat.shape[0]
    padded = ((total + tile_c - 1) // tile_c) * tile_c
    if padded != total:
        flat = jnp.pad(flat, (0, padded - total))
    return flat.reshape(padded // tile_c, tile_c), total


def mse_loss_pallas(pred, target, weight=None, *, loss_weight=1.0):
    """loss_weight + (pred - target)**2 [* weight], elementwise (reduction='none')."""
    assert pred.shape == target.shape
    orig_shape = pred.shape

    pred2d, total = _flatten_lane_dense(pred, _TILE_C)
    target2d, _ = _flatten_lane_dense(target, _TILE_C)
    rows, cols = pred2d.shape

    tile_r = min(_MAX_TILE_R, rows)          # == rows (full extent) when small, else 8-aligned 512
    grid = (pl.cdiv(rows, tile_r),)

    # index_maps receive the scalar-prefetch ref as a trailing positional arg.
    tile_spec = pl.BlockSpec((tile_r, cols), lambda i, lw: (i, 0))

    lw_arr = jnp.full((1,), loss_weight, dtype=jnp.float32)
    out_shape = jax.ShapeDtypeStruct((rows, cols), pred.dtype)
    compiler_params = pltpu.CompilerParams(
        dimension_semantics=("parallel",),
        vmem_limit_bytes=_VMEM_LIMIT_BYTES,
    )

    if weight is None:
        grid_spec = pltpu.PrefetchScalarGridSpec(
            num_scalar_prefetch=1,
            grid=grid,
            in_specs=[tile_spec, tile_spec],
            out_specs=tile_spec,
        )
        out2d = pl.pallas_call(
            _mse_kernel,
            out_shape=out_shape,
            grid_spec=grid_spec,
            compiler_params=compiler_params,
        )(lw_arr, pred2d, target2d)
    else:
        # TODO(synk): the literal reference `mse_loss(perd, target)` takes no weight arg (calling it
        # with one would raise); we support an optional elementwise weight as a best-effort extension.
        assert weight.shape == pred.shape
        weight2d, _ = _flatten_lane_dense(weight, _TILE_C)
        grid_spec = pltpu.PrefetchScalarGridSpec(
            num_scalar_prefetch=1,
            grid=grid,
            in_specs=[tile_spec, tile_spec, tile_spec],
            out_specs=tile_spec,
        )
        out2d = pl.pallas_call(
            _mse_weighted_kernel,
            out_shape=out_shape,
            grid_spec=grid_spec,
            compiler_params=compiler_params,
        )(lw_arr, pred2d, target2d, weight2d)

    return out2d.reshape(-1)[:total].reshape(orig_shape)


class MSELossPallas:
    """Mirror of the PyTorch MSELoss module.

    The `reduction` arg is validated but (as in the reference, whose inner mse_loss hardcodes
    reduction='none' and whose forward just adds loss_weight) it is not applied to the output.
    """

    def __init__(self, loss_weight=1.0, reduction='mean'):
        if reduction not in ['mean', 'none', 'sum']:
            raise ValueError(
                "Unsupported reduction mode {}.Supported ones in ['mean', 'none', 'sum']".format(reduction))
        self.loss_weight = loss_weight
        self.reduction = reduction

    def __call__(self, pred, target, weight=None, **kwargs):
        # Reference forward: loss_weight + elementwise squared error (reduction='none').
        return mse_loss_pallas(pred, target, weight, loss_weight=self.loss_weight)


if __name__ == "__main__":
    key = jax.random.PRNGKey(0)
    k1, k2, k3 = jax.random.split(key, 3)
    n, c, h, w = 2, 4, 16, 16
    pred = jax.random.normal(k1, (n, c, h, w), dtype=jnp.float32)
    target = jax.random.normal(k2, (n, c, h, w), dtype=jnp.float32)
    weight = jax.random.uniform(k3, (n, c, h, w), dtype=jnp.float32)

    loss_mod = MSELossPallas(loss_weight=1.0, reduction='mean')

    # Unweighted path.
    out = jax.block_until_ready(loss_mod(pred, target))
    ref = 1.0 + (pred - target) ** 2
    assert out.shape == (n, c, h, w)
    assert jnp.allclose(out, ref, atol=1e-6, rtol=1e-6)

    # Weighted path.
    out_w = jax.block_until_ready(loss_mod(pred, target, weight))
    ref_w = 1.0 + (pred - target) ** 2 * weight
    assert jnp.allclose(out_w, ref_w, atol=1e-6, rtol=1e-6)

    # Non-lane-aligned shape exercises the zero-pad path.
    p2 = jax.random.normal(k1, (2, 3, 7, 5), dtype=jnp.float32)
    t2 = jax.random.normal(k2, (2, 3, 7, 5), dtype=jnp.float32)
    out2 = jax.block_until_ready(mse_loss_pallas(p2, t2, loss_weight=0.5))
    assert jnp.allclose(out2, 0.5 + (p2 - t2) ** 2, atol=1e-6, rtol=1e-6)

    print("KERNEL_OK")
</pallas_src>

<mosaic_0001>
module attributes {stable_mosaic.version = 11 : i64} {
  func.func @_mse_kernel(%arg0: i32, %arg1: memref<1xf32, #tpu.memory_space<smem>>, %arg2: memref<2x1024xf32, #tpu.memory_space<vmem>>, %arg3: memref<2x1024xf32, #tpu.memory_space<vmem>>, %arg4: memref<2x1024xf32, #tpu.memory_space<vmem>>) attributes {dimension_semantics = [#tpu.dimension_semantics<parallel>], iteration_bounds = array<i64: 1>, scalar_prefetch = 1 : i64, scratch_operands = 0 : i64, tpu.core_type = #tpu.core_type<tc>, window_params = [{transform_indices = @transform_0, window_bounds = array<i64: 2, 1024>}, {transform_indices = @transform_1, window_bounds = array<i64: 2, 1024>}, {transform_indices = @transform_2, window_bounds = array<i64: 2, 1024>}]} {
    %c0 = arith.constant 0 : index
    %0 = memref.load %arg1[%c0] : memref<1xf32, #tpu.memory_space<smem>>
    %c0_0 = arith.constant 0 : index
    %c0_1 = arith.constant 0 : index
    %1 = vector.load %arg2[%c0_0, %c0_1] : memref<2x1024xf32, #tpu.memory_space<vmem>>, vector<2x1024xf32>
    %c0_2 = arith.constant 0 : index
    %c0_3 = arith.constant 0 : index
    %2 = vector.load %arg3[%c0_2, %c0_3] : memref<2x1024xf32, #tpu.memory_space<vmem>>, vector<2x1024xf32>
    %3 = arith.subf %1, %2 : vector<2x1024xf32>
    %4 = arith.mulf %3, %3 : vector<2x1024xf32>
    %5 = vector.broadcast %0 : f32 to vector<2x1024xf32>
    %6 = arith.addf %5, %4 : vector<2x1024xf32>
    %c0_4 = arith.constant 0 : index
    %c0_5 = arith.constant 0 : index
    %7 = vector.load %arg4[%c0_4, %c0_5] : memref<2x1024xf32, #tpu.memory_space<vmem>>, vector<2x1024xf32>
    tpu.vector_store %arg4[%c0_4, %c0_5], %6 {strides = array<i32>} : memref<2x1024xf32, #tpu.memory_space<vmem>>, vector<2x1024xf32>,
    return
  }
  func.func @transform_0(%arg0: i32, %arg1: memref<1xf32, #tpu.memory_space<smem>>) -> (i32, i32) {
    %c0_i32 = arith.constant 0 : i32
    %c0_i32_0 = arith.constant 0 : i32
    return %arg0, %c0_i32 : i32, i32
  }
  func.func @transform_1(%arg0: i32, %arg1: memref<1xf32, #tpu.memory_space<smem>>) -> (i32, i32) {
    %c0_i32 = arith.constant 0 : i32
    %c0_i32_0 = arith.constant 0 : i32
    return %arg0, %c0_i32 : i32, i32
  }
  func.func @transform_2(%arg0: i32, %arg1: memref<1xf32, #tpu.memory_space<smem>>) -> (i32, i32) {
    %c0_i32 = arith.constant 0 : i32
    %c0_i32_0 = arith.constant 0 : i32
    return %arg0, %c0_i32 : i32, i32
  }
}

</mosaic_0001>

<llo_original>
// kernel: tpu_custom_call.1
$region0: #{tpu_custom_call.1}
  #allocation0 [shape = 'u32[]', space=smem, size = 0x4, offset = 0x4, fixed_abs, tag = 'smem constant byte address 0x4 - core index']
  #allocation1 [shape = 'u32[144,128]{1,0:T(1,128)}', space=vmem, size = 0x12000, scoped, tag = 'internal scratch']
  #allocation2 [shape = 's32[1]{0}', space=sflag, size = 0x4, scoped, tag = 'scoped memory for tpu_custom_call.1']
  #allocation3 [shape = 'f32[1]{0:T(128)S(6)}', space=smem, size = 0x200, scoped, tag = 'prefetched SMEM operand 0']
  %s0 = inlined_call_operand.<no memory space> [shape: f32[1], index: 0, kind: input, shape index: {}]
  %s1 = inlined_call_operand.hbm [shape: f32[2,1024], index: 1, kind: input, shape index: {}]
  %s2 = inlined_call_operand.hbm [shape: f32[2,1024], index: 2, kind: input, shape index: {}]
  %s3 = inlined_call_operand.hbm [shape: f32[2,1024], index: 3, kind: output, shape index: {}]
  %s4 = sld [smem:[#allocation0]]
  $region26: #{tpu_custom_call.1} parent=0
    _
  %s6 = ssub.s32 1, %s4
  %s7 = scalar_select 0, %s6, %s4
  %8 = sst [smem:[#allocation3]] %s0
  $region1: #{tpu_custom_call.1} parent=0
    #allocation4 [shape = 'u8[8192]{0}', space=vmem, size = 0x2000, scoped, tag = 'input window, operand 1, single buffered']
    #allocation5 [shape = 's32[1]{0}', space=sflag, size = 0x4, scoped, tag = 'scoped memory for tpu_custom_call.1']
    #allocation6 [shape = 's32[1]{0}', space=sflag, size = 0x4, scoped, tag = 'scoped memory for tpu_custom_call.1']
    #allocation7 [shape = 'u8[8192]{0}', space=vmem, size = 0x2000, scoped, tag = 'input window, operand 2, single buffered']
    #allocation8 [shape = 's32[1]{0}', space=sflag, size = 0x4, scoped, tag = 'scoped memory for tpu_custom_call.1']
    #allocation9 [shape = 'u8[8192]{0}', space=vmem, size = 0x2000, scoped, tag = 'output window, operand 0, single buffered']
    %9 = vsyncpa [#allocation5], 0
    %10 = vsyncpa [#allocation8], 0
    %11 = vsyncpa [#allocation6], 0
    // Predicated region
    $region2: #{tpu_custom_call.1} parent=1 // pred_check
      _
    $region3: #{tpu_custom_call.1} parent=1 // pred_check_branch
      %13 = sbr.rel (0) target = $region5
    $region4: #{tpu_custom_call.1} parent=1 // pred_region
      %s15 = ssub.s32 256, 256
      %16 = vsyncadd [#allocation5], %s15
      %s18 = sshll.u32 [#allocation4], 4
      %s19 = int_to_ptr.vmem [resolvable:$true] %s18
      %21 = dma.hbm_to_vmem [thread:$0]  %s1, 256, %s19, [#allocation5]
    $region5: #{tpu_custom_call.1} parent=1 // pred_fallthru
      _
    // Predicated region
    $region6: #{tpu_custom_call.1} parent=1 // pred_check
      _
    $region7: #{tpu_custom_call.1} parent=1 // pred_check_branch
      %23 = sbr.rel (0) target = $region9
    $region8: #{tpu_custom_call.1} parent=1 // pred_region
      %s25 = ssub.s32 256, 256
      %26 = vsyncadd [#allocation8], %s25
      %s28 = sshll.u32 [#allocation7], 4
      %s29 = int_to_ptr.vmem [resolvable:$true] %s28
      %31 = dma.hbm_to_vmem [thread:$0]  %s2, 256, %s29, [#allocation8]
    $region9: #{tpu_custom_call.1} parent=1 // pred_fallthru
      _
    // Predicated region
    $region10: #{tpu_custom_call.1} parent=1 // pred_check
      _
    $region11: #{tpu_custom_call.1} parent=1 // pred_check_branch
      %33 = sbr.rel (0) target = $region13
    $region12: #{tpu_custom_call.1} parent=1 // pred_region
      %34 = dma.done [#allocation5], 256
    $region13: #{tpu_custom_call.1} parent=1 // pred_fallthru
      _
    // Predicated region
    $region14: #{tpu_custom_call.1} parent=1 // pred_check
      _
    $region15: #{tpu_custom_call.1} parent=1 // pred_check_branch
      %36 = sbr.rel (0) target = $region17
    $region16: #{tpu_custom_call.1} parent=1 // pred_region
      %37 = dma.done [#allocation8], 256
    $region17: #{tpu_custom_call.1} parent=1 // pred_fallthru
      _
    %s38 = sld [smem:[#allocation3]]
    %v39 = vld [vmem:[#allocation4] sm:$0xff]
    %v40 = vld [vmem:[#allocation4 + $0x8] sm:$0xff]
    %v41 = vld [vmem:[#allocation7] sm:$0xff]
    %v42 = vld [vmem:[#allocation7 + $0x8] sm:$0xff]
    %v43 = vsub.f32 %v39, %v41
    %v44 = vsub.f32 %v40, %v42
    %v45 = vmul.f32 %v43, %v43
    %v46 = vmul.f32 %v44, %v44
    %v47 = vstv %s38
    %v48 = vadd.f32 %v47, %v45
    %v49 = vadd.f32 %v47, %v46
    %50 = vst [vmem:[#allocation9] sm:$0xff] %v48
    %51 = vst [vmem:[#allocation9 + $0x8] sm:$0xff] %v49
    // Predicated region
    $region18: #{tpu_custom_call.1} parent=1 // pred_check
      _
    $region19: #{tpu_custom_call.1} parent=1 // pred_check_branch
      %53 = sbr.rel (0) target = $region21
    $region20: #{tpu_custom_call.1} parent=1 // pred_region
      %s55 = ssub.s32 256, 256
      %56 = vsyncadd [#allocation6], %s55
      %s58 = sshll.u32 [#allocation9], 4
      %s59 = int_to_ptr.vmem [resolvable:$true] %s58
      %61 = dma.vmem_to_hbm [thread:$0]  %s59, 256, %s3, [#allocation6]
    $region21: #{tpu_custom_call.1} parent=1 // pred_fallthru
      _
    // Predicated region
    $region22: #{tpu_custom_call.1} parent=1 // pred_check
      _
    $region23: #{tpu_custom_call.1} parent=1 // pred_check_branch
      %63 = sbr.rel (0) target = $region25
    $region24: #{tpu_custom_call.1} parent=1 // pred_region
      %64 = dma.done [#allocation6], 256
    $region25: #{tpu_custom_call.1} parent=1 // pred_fallthru
      _
    %65 = vsyncpa [#allocation5], 1
    %66 = vsyncpa [#allocation8], 1
    %67 = vsyncpa [#allocation6], 1

</llo_original>
